<compile_context>
chip_gen: v7x
topology: tpu7x:2x2x1
jax: 0.10.0
libtpu: 0.0.40
codegen_flags: <defaults>
</compile_context>

<pallas_src>
import math

import jax
import jax.numpy as jnp
from jax.experimental import pallas as pl
from jax.experimental.pallas import tpu as pltpu


def _round_up(x, m):
    return ((x + m - 1) // m) * m


def _ffn_kernel_f32_out(x_ref, w_ref, b_ref, o_ref):
    # f32 output: the output block itself is the accumulator (resident across K axis).
    @pl.when(pl.program_id(2) == 0)
    def _():
        o_ref[...] = jnp.broadcast_to(b_ref[...].astype(jnp.float32), o_ref.shape)

    o_ref[...] += jnp.dot(x_ref[...], w_ref[...],
                          preferred_element_type=jnp.float32)


def _ffn_kernel_lowp_out(x_ref, w_ref, b_ref, o_ref, acc_ref):
    # Low-precision output: keep an f32 VMEM accumulator, single cast on the final store.
    @pl.when(pl.program_id(2) == 0)
    def _():
        acc_ref[...] = jnp.broadcast_to(b_ref[...].astype(jnp.float32), acc_ref.shape)

    acc_ref[...] += jnp.dot(x_ref[...], w_ref[...],
                            preferred_element_type=jnp.float32)

    @pl.when(pl.program_id(2) == pl.num_programs(2) - 1)
    def _():
        o_ref[...] = acc_ref[...].astype(o_ref.dtype)


def prepare_linear_params(weight, bias):
    """One-time parameter prep (hoist out of the per-call path).

    weight: (N, K) PyTorch nn.Linear layout -> (Kp, N) with K zero-padded to a multiple
    of 128 so every K tile of the contraction is exact (zero rows contribute nothing).
    bias: (N,) -> (1, N).
    """
    N, K = weight.shape
    Kp = _round_up(K, 128)
    w_kn = weight.T  # (K, N)
    if Kp != K:
        w_kn = jnp.pad(w_kn, ((0, Kp - K), (0, 0)))
    b2d = bias.reshape(1, N)
    return w_kn, b2d


def _vmem_capacity_bytes():
    try:
        cap = int(getattr(pltpu.get_tpu_info(), "vmem_capacity_bytes"))
        if cap > 0:
            return cap
    except Exception:
        pass
    return 64 << 20  # conservative (v7x-sized) fallback


def positionwise_feed_forward(x, w_kn, b2d, *, tm=None, tn=None, tk=None):
    """y = x @ W^T + b where (w_kn, b2d) come from prepare_linear_params(W, b).

    x: (..., K); w_kn: (Kp, N); b2d: (1, N).
    """
    *lead, K = x.shape
    Kp, N = w_kn.shape
    assert _round_up(K, 128) == Kp, "w_kn must come from prepare_linear_params"
    M = int(math.prod(lead)) if lead else 1

    x2d = x.reshape(M, K)
    if K != Kp:
        # Rare path (K not 128-aligned): pad only the K dim so the reduction is exact.
        x2d = jnp.pad(x2d, ((0, 0), (0, Kp - K)))

    out_dtype = x.dtype
    use_scratch = jnp.dtype(out_dtype) != jnp.dtype(jnp.float32)

    # --- Generation-aware tile defaults -------------------------------------------------
    vmem_cap = _vmem_capacity_bytes()
    big_vmem = vmem_cap >= (100 << 20)  # v5e / v6e: 128 MiB; v7x: 64 MiB
    itemsize = jnp.dtype(x2d.dtype).itemsize
    if tm is None:
        tm = 512
    if tn is None:
        tn = 512
    if tk is None:
        tk = 1024 if big_vmem else 512
        if itemsize <= 2:
            tk *= 2

    # Clamp to the problem size, keep TPU layout rules (sublane x8, lane x128).
    tm = max(8, _round_up(min(int(tm), _round_up(M, 8)), 8))
    tn = max(128, _round_up(min(int(tn), _round_up(N, 128)), 128))
    tk = max(128, _round_up(min(int(tk), Kp), 128))
    # K is the reduction axis: its tile must divide Kp exactly (no masked reduction tail).
    while Kp % tk:
        tk -= 128

    # --- VMEM budget: shrink tiles to fit, then set an explicit limit -------------------
    xb = x2d.dtype.itemsize
    wb = w_kn.dtype.itemsize
    bb = b2d.dtype.itemsize
    ob = jnp.dtype(out_dtype).itemsize

    def tiles_bytes(tm_, tn_, tk_):
        s = (2 * tm_ * tk_ * xb      # x tiles (double-buffered)
             + 2 * tk_ * tn_ * wb    # weight tiles
             + 2 * tn_ * bb          # bias tiles
             + 2 * tm_ * tn_ * ob)   # output tiles
        if use_scratch:
            s += tm_ * tn_ * 4       # f32 accumulator scratch
        return s

    budget = max(int(vmem_cap * 0.75) - (8 << 20), 24 << 20)
    while tiles_bytes(tm, tn, tk) > budget and tk > 128:
        tk = max(128, _round_up(tk // 2, 128))
        while Kp % tk:
            tk -= 128
    while tiles_bytes(tm, tn, tk) > budget and tn > 128:
        tn = max(128, _round_up(tn // 2, 128))
    while tiles_bytes(tm, tn, tk) > budget and tm > 8:
        tm = max(8, _round_up(tm // 2, 8))

    vmem_limit = min(max(tiles_bytes(tm, tn, tk) + (8 << 20), 32 << 20),
                     int(vmem_cap * 0.75))

    # Ragged M / N edges are handled by the grid (masked boundary blocks); only the
    # reduction axis needs exact division.
    grid = (pl.cdiv(M, tm), pl.cdiv(N, tn), Kp // tk)

    cost = pl.CostEstimate(
        flops=2 * M * N * Kp,
        transcendentals=0,
        bytes_accessed=int(M * Kp * xb + Kp * N * wb + N * bb + M * N * ob),
    )

    kernel = _ffn_kernel_lowp_out if use_scratch else _ffn_kernel_f32_out
    scratch_shapes = [pltpu.VMEM((tm, tn), jnp.float32)] if use_scratch else []

    out = pl.pallas_call(
        kernel,
        out_shape=jax.ShapeDtypeStruct((M, N), out_dtype),
        grid_spec=pltpu.PrefetchScalarGridSpec(
            num_scalar_prefetch=0,
            grid=grid,
            in_specs=[
                pl.BlockSpec((tm, tk), lambda i, j, k: (i, k)),  # x rows x K-chunk
                pl.BlockSpec((tk, tn), lambda i, j, k: (k, j)),  # weight K-chunk x N-chunk
                pl.BlockSpec((1, tn), lambda i, j, k: (0, j)),   # bias N-chunk
            ],
            out_specs=pl.BlockSpec((tm, tn), lambda i, j, k: (i, j)),
            scratch_shapes=scratch_shapes,
        ),
        compiler_params=pltpu.CompilerParams(
            dimension_semantics=("parallel", "parallel", "arbitrary"),
            vmem_limit_bytes=int(vmem_limit),
        ),
        cost_estimate=cost,
    )(x2d, w_kn, b2d)

    return out.reshape(*lead, N)


if __name__ == "__main__":
    # Small shapes consistent with the module: batch=2, seq=8, input_size=32, output_size=64
    input_size, output_size = 32, 64
    batch, seq = 2, 8

    key = jax.random.PRNGKey(0)
    kx, kw, kb = jax.random.split(key, 3)

    # Deterministic parameter init mimicking nn.Linear default (uniform +-1/sqrt(in))
    bound = 1.0 / math.sqrt(input_size)
    weight = jax.random.uniform(kw, (output_size, input_size),
                                minval=-bound, maxval=bound, dtype=jnp.float32)
    bias = jax.random.uniform(kb, (output_size,),
                              minval=-bound, maxval=bound, dtype=jnp.float32)

    x = jax.random.normal(kx, (batch, seq, input_size), dtype=jnp.float32)

    # Layout prep happens ONCE (parameter-load time), not per forward call.
    w_kn, b2d = prepare_linear_params(weight, bias)

    y = positionwise_feed_forward(x, w_kn, b2d)
    y = jax.block_until_ready(y)

    # Sanity check against plain-JAX reference of the same math.
    y_ref = x @ weight.T + bias
    assert y.shape == (batch, seq, output_size)
    assert jnp.allclose(y, y_ref, atol=1e-5, rtol=1e-5)

    print("KERNEL_OK")
</pallas_src>

<mosaic_0001>
module attributes {stable_mosaic.version = 11 : i64} {
  func.func @_ffn_kernel_f32_out(%arg0: i32, %arg1: i32, %arg2: i32, %arg3: memref<16x128xf32, #tpu.memory_space<vmem>>, %arg4: memref<128x128xf32, #tpu.memory_space<vmem>>, %arg5: memref<1x128xf32, #tpu.memory_space<vmem>>, %arg6: memref<16x128xf32, #tpu.memory_space<vmem>>) attributes {dimension_semantics = [#tpu.dimension_semantics<parallel>, #tpu.dimension_semantics<parallel>, #tpu.dimension_semantics<arbitrary>], iteration_bounds = array<i64: 1, 1, 1>, scalar_prefetch = 0 : i64, scratch_operands = 0 : i64, tpu.core_type = #tpu.core_type<tc>, window_params = [{transform_indices = @transform_0, window_bounds = array<i64: 16, 128>}, {transform_indices = @transform_1, window_bounds = array<i64: 128, 128>}, {transform_indices = @transform_2, window_bounds = array<i64: 1, 128>}, {transform_indices = @transform_3, window_bounds = array<i64: 16, 128>}]} {
    %c0_i32 = arith.constant 0 : i32
    %0 = arith.cmpi eq, %arg2, %c0_i32 : i32
    %1 = arith.extui %0 : i1 to i32
    %c0_i32_0 = arith.constant 0 : i32
    %2 = arith.cmpi ne, %1, %c0_i32_0 : i32
    scf.if %2 {
      %c0_8 = arith.constant 0 : index
      %c0_9 = arith.constant 0 : index
      %9 = vector.load %arg5[%c0_8, %c0_9] : memref<1x128xf32, #tpu.memory_space<vmem>>, vector<1x128xf32>
      %10 = vector.shape_cast %9 : vector<1x128xf32> to vector<1x128xf32>
      %11 = vector.broadcast %10 : vector<1x128xf32> to vector<16x128xf32>
      %c0_10 = arith.constant 0 : index
      %c0_11 = arith.constant 0 : index
      %12 = vector.load %arg6[%c0_10, %c0_11] : memref<16x128xf32, #tpu.memory_space<vmem>>, vector<16x128xf32>
      tpu.vector_store %arg6[%c0_10, %c0_11], %11 {strides = array<i32>} : memref<16x128xf32, #tpu.memory_space<vmem>>, vector<16x128xf32>,
    } else {
    }
    %c0 = arith.constant 0 : index
    %c0_1 = arith.constant 0 : index
    %3 = vector.load %arg6[%c0, %c0_1] : memref<16x128xf32, #tpu.memory_space<vmem>>, vector<16x128xf32>
    %c0_2 = arith.constant 0 : index
    %c0_3 = arith.constant 0 : index
    %4 = vector.load %arg3[%c0_2, %c0_3] : memref<16x128xf32, #tpu.memory_space<vmem>>, vector<16x128xf32>
    %c0_4 = arith.constant 0 : index
    %c0_5 = arith.constant 0 : index
    %5 = vector.load %arg4[%c0_4, %c0_5] : memref<128x128xf32, #tpu.memory_space<vmem>>, vector<128x128xf32>
    %cst = arith.constant dense<0.000000e+00> : vector<16x128xf32>
    %6 = tpu.matmul %4, %5, %cst {dimension_numbers = #tpu.dot_dimension_numbers<[1], [0], [0], [1], [0, 0, 1, 1], [], []>} : vector<16x128xf32>, vector<128x128xf32>, vector<16x128xf32> -> vector<16x128xf32>
    %7 = arith.addf %3, %6 : vector<16x128xf32>
    %c0_6 = arith.constant 0 : index
    %c0_7 = arith.constant 0 : index
    %8 = vector.load %arg6[%c0_6, %c0_7] : memref<16x128xf32, #tpu.memory_space<vmem>>, vector<16x128xf32>
    tpu.vector_store %arg6[%c0_6, %c0_7], %7 {strides = array<i32>} : memref<16x128xf32, #tpu.memory_space<vmem>>, vector<16x128xf32>,
    return
  }
  func.func @transform_0(%arg0: i32, %arg1: i32, %arg2: i32) -> (i32, i32) {
    %c0_i32 = arith.constant 0 : i32
    return %arg0, %arg2 : i32, i32
  }
  func.func @transform_1(%arg0: i32, %arg1: i32, %arg2: i32) -> (i32, i32) {
    %c0_i32 = arith.constant 0 : i32
    return %arg2, %arg1 : i32, i32
  }
  func.func @transform_2(%arg0: i32, %arg1: i32, %arg2: i32) -> (i32, i32) {
    %c0_i32 = arith.constant 0 : i32
    %c0_i32_0 = arith.constant 0 : i32
    return %c0_i32, %arg1 : i32, i32
  }
  func.func @transform_3(%arg0: i32, %arg1: i32, %arg2: i32) -> (i32, i32) {
    %c0_i32 = arith.constant 0 : i32
    return %arg0, %arg1 : i32, i32
  }
}

</mosaic_0001>

<llo_original>
// kernel: tpu_custom_call.1
$region0: #{tpu_custom_call.1}
  #allocation0 [shape = 'u32[]', space=smem, size = 0x4, offset = 0x4, fixed_abs, tag = 'smem constant byte address 0x4 - core index']
  #allocation1 [shape = 'u32[144,128]{1,0:T(1,128)}', space=vmem, size = 0x12000, scoped, tag = 'internal scratch']
  %s0 = inlined_call_operand.vmem [shape: f32[16,128], index: 0, kind: input, shape index: {}]
  %s1 = inlined_call_operand.vmem [shape: f32[128,64], index: 1, kind: input, shape index: {}]
  %s2 = inlined_call_operand.vmem [shape: f32[1,64], index: 2, kind: input, shape index: {}]
  %s3 = inlined_call_operand.hbm [shape: f32[16,64], index: 3, kind: output, shape index: {}]
  %s4 = sld [smem:[#allocation0]]
  $region26: #{tpu_custom_call.1} parent=0
    _
  %s6 = ssub.s32 1, %s4
  %s7 = scalar_select 0, %s6, %s4
  $region1: #{tpu_custom_call.1} parent=0
    #allocation2 [shape = 'u8[8192]{0}', space=vmem, size = 0x2000, scoped, tag = 'output window, operand 0, single buffered']
    #allocation3 [shape = 's32[1]{0}', space=sflag, size = 0x4, scoped, tag = 'scoped memory for tpu_custom_call.1']
    %8 = vsyncpa [#allocation3], 0
    // Predicated region
    $region2: #{tpu_custom_call.1} parent=1 // pred_check
      _
    $region3: #{tpu_custom_call.1} parent=1 // pred_check_branch
      %10 = sbr.rel (0) target = $region5
    $region4: #{tpu_custom_call.1} parent=1 // pred_region
      _
    $region5: #{tpu_custom_call.1} parent=1 // pred_fallthru
      _
    // Predicated region
    $region6: #{tpu_custom_call.1} parent=1 // pred_check
      _
    $region7: #{tpu_custom_call.1} parent=1 // pred_check_branch
      %12 = sbr.rel (0) target = $region9
    $region8: #{tpu_custom_call.1} parent=1 // pred_region
      _
    $region9: #{tpu_custom_call.1} parent=1 // pred_fallthru
      _
    // Predicated region
    $region10: #{tpu_custom_call.1} parent=1 // pred_check
      _
    $region11: #{tpu_custom_call.1} parent=1 // pred_check_branch
      %14 = sbr.rel (0) target = $region13
    $region12: #{tpu_custom_call.1} parent=1 // pred_region
      _
    $region13: #{tpu_custom_call.1} parent=1 // pred_fallthru
      _
    %p15 = scmp.eq.s32.totalorder 0, 0
    // Predicated region
    $region14: #{tpu_custom_call.1} parent=1 // pred_check
      %p16 = pneg %p15
    $region15: #{tpu_custom_call.1} parent=1 // pred_check_branch
      %18 = sbr.rel (%p16) target = $region17
    $region16: #{tpu_custom_call.1} parent=1 // pred_region
      %v19 = vld [vmem:[%s2] sm:$0x1]
      %v21 = vlaneseq
      %v22 = vshrl.u32 %v21, 7
      %v23 = vsub.s32 0, %v22
      %v24 = vrot.slane %v19, %v23
      %26 = vst [vmem:[#allocation2] sm:$0xff] %v24
      %27 = vst [vmem:[#allocation2 + $0x8] sm:$0xff] %v24
    $region17: #{tpu_custom_call.1} parent=1 // pred_fallthru
      _
    %v28 = vld [vmem:[#allocation2] sm:$0xff]
    %v29 = vld [vmem:[#allocation2 + $0x8] sm:$0xff]
    %v30 = vld [vmem:[%s0] sm:$0xff]
    %v31 = vld [vmem:[%s0 + $0x8] sm:$0xff]
    %v32 = vld [vmem:[%s1] sm:$0xff]
    %v33 = vld [vmem:[%s1 + $0x8] sm:$0xff]
    %v34 = vld [vmem:[%s1 + $0x10] sm:$0xff]
    %v35 = vld [vmem:[%s1 + $0x18] sm:$0xff]
    %v36 = vld [vmem:[%s1 + $0x20] sm:$0xff]
    %v37 = vld [vmem:[%s1 + $0x28] sm:$0xff]
    %v38 = vld [vmem:[%s1 + $0x30] sm:$0xff]
    %v39 = vld [vmem:[%s1 + $0x38] sm:$0xff]
    %v40 = vld [vmem:[%s1 + $0x40] sm:$0xff]
    %v41 = vld [vmem:[%s1 + $0x48] sm:$0xff]
    %v42 = vld [vmem:[%s1 + $0x50] sm:$0xff]
    %v43 = vld [vmem:[%s1 + $0x58] sm:$0xff]
    %v44 = vld [vmem:[%s1 + $0x60] sm:$0xff]
    %v45 = vld [vmem:[%s1 + $0x68] sm:$0xff]
    %v46 = vld [vmem:[%s1 + $0x70] sm:$0xff]
    %v47 = vld [vmem:[%s1 + $0x78] sm:$0xff]
    %48 = vmatprep.subr.mxu0 0.0
    %49 = vmatpush1.msra.mxu0 %v32
    %50 = vmatprep.subr.mxu0 0.0
    %51 = vmatpush1.msra.mxu0 %v33
    %52 = vmatprep.subr.mxu0 0.0
    %53 = vmatpush1.msra.mxu0 %v34
    %54 = vmatprep.subr.mxu0 0.0
    %55 = vmatpush1.msra.mxu0 %v35
    %56 = vmatprep.subr.mxu0 0.0
    %57 = vmatpush1.msra.mxu0 %v36
    %58 = vmatprep.subr.mxu0 0.0
    %59 = vmatpush1.msra.mxu0 %v37
    %60 = vmatprep.subr.mxu0 0.0
    %61 = vmatpush1.msra.mxu0 %v38
    %62 = vmatprep.subr.mxu0 0.0
    %63 = vmatpush1.msra.mxu0 %v39
    %64 = vmatprep.subr.mxu0 0.0
    %65 = vmatpush1.msra.mxu0 %v40
    %66 = vmatprep.subr.mxu0 0.0
    %67 = vmatpush1.msra.mxu0 %v41
    %68 = vmatprep.subr.mxu0 0.0
    %69 = vmatpush1.msra.mxu0 %v42
    %70 = vmatprep.subr.mxu0 0.0
    %71 = vmatpush1.msra.mxu0 %v43
    %72 = vmatprep.subr.mxu0 0.0
    %73 = vmatpush1.msra.mxu0 %v44
    %74 = vmatprep.subr.mxu0 0.0
    %75 = vmatpush1.msra.mxu0 %v45
    %76 = vmatprep.subr.mxu0 0.0
    %77 = vmatpush1.msra.mxu0 %v46
    %78 = vmatprep.subr.mxu0 0.0
    %79 = vmatpush1.msra.mxu0 %v47
    %80 = vmatprep.subr.mxu0 0.0
    %81 = vmatpush1.msra.mxu0 0.0
    %82 = vmatprep.subr.mxu0 0.0
    %83 = vmatpush1.msra.mxu0 0.0
    %84 = vmatprep.subr.mxu0 0.0
    %85 = vmatpush1.msra.mxu0 0.0
    %86 = vmatprep.subr.mxu0 0.0
    %87 = vmatpush1.msra.mxu0 0.0
    %88 = vmatprep.subr.mxu0 0.0
    %89 = vmatpush1.msra.mxu0 0.0
    %90 = vmatprep.subr.mxu0 0.0
    %91 = vmatpush1.msra.mxu0 0.0
    %92 = vmatprep.subr.mxu0 0.0
    %93 = vmatpush1.msra.mxu0 0.0
    %94 = vmatprep.subr.mxu0 0.0
    %95 = vmatpush1.msra.mxu0 0.0
    %96 = vmatprep.subr.mxu0 0.0
    %97 = vmatpush1.msra.mxu0 0.0
    %98 = vmatprep.subr.mxu0 0.0
    %99 = vmatpush1.msra.mxu0 0.0
    %100 = vmatprep.subr.mxu0 0.0
    %101 = vmatpush1.msra.mxu0 0.0
    %102 = vmatprep.subr.mxu0 0.0
    %103 = vmatpush1.msra.mxu0 0.0
    %104 = vmatprep.subr.mxu0 0.0
    %105 = vmatpush1.msra.mxu0 0.0
    %106 = vmatprep.subr.mxu0 0.0
    %107 = vmatpush1.msra.mxu0 0.0
    %108 = vmatprep.subr.mxu0 0.0
    %109 = vmatpush1.msra.mxu0 0.0
    %110 = vmatprep.subr.mxu0 0.0
    %111 = vmatpush1.msra.mxu0 0.0
    %112 = vmatprep.mubr.f32.mxu0 0.0
    %113 = vmatmul.mubr.f32.gmra.mrb[0].mxu0 %v30
    %v114 = vpop.f32.mrb[0].mxu0
    %v115 = vadd.f32 0.0, %v114
    %v116 = vpop.f32.mrb[0].mxu0
    %117 = vmatprep.mubr.f32.mxu0 0.0
    %118 = vmatmul.mubr.f32.gmra.mrb[0].mxu0 %v31
    %v119 = vpop.f32.mrb[0].mxu0
    %v120 = vadd.f32 0.0, %v119
    %v121 = vpop.f32.mrb[0].mxu0
    %122 = vdwg.mxu0
    %v123 = vadd.f32 %v28, %v115
    %v124 = vadd.f32 %v29, %v120
    %125 = vst [vmem:[#allocation2] sm:$0xff] %v123
    %126 = vst [vmem:[#allocation2 + $0x8] sm:$0xff] %v124
    // Predicated region
    $region18: #{tpu_custom_call.1} parent=1 // pred_check
      _
    $region19: #{tpu_custom_call.1} parent=1 // pred_check_branch
      %128 = sbr.rel (0) target = $region21
    $region20: #{tpu_custom_call.1} parent=1 // pred_region
      %s130 = ssub.s32 256, 256
      %131 = vsyncadd [#allocation3], %s130
      %s132 = sshll.u32 [#allocation2], 4
      %s133 = int_to_ptr.vmem [resolvable:$true] %s132
      %138 = dma.vmem_to_hbm [thread:$0]  %s133, 256, %s3, [#allocation3], 128, 128, 8
    $region21: #{tpu_custom_call.1} parent=1 // pred_fallthru
      _
    // Predicated region
    $region22: #{tpu_custom_call.1} parent=1 // pred_check
      _
    $region23: #{tpu_custom_call.1} parent=1 // pred_check_branch
      %140 = sbr.rel (0) target = $region25
    $region24: #{tpu_custom_call.1} parent=1 // pred_region
      %141 = dma.done [#allocation3], 256
    $region25: #{tpu_custom_call.1} parent=1 // pred_fallthru
      _
    %142 = vsyncpa [#allocation3], 1

</llo_original>
